<compile_context>
chip_gen: v6e
topology: v6e:2x2x1
jax: 0.10.0
libtpu: 0.0.40
codegen_flags: <defaults>
</compile_context>

<pallas_src>
import jax
import jax.numpy as jnp
from jax.experimental import pallas as pl
from jax.experimental.pallas import tpu as pltpu


def _policy_kernel(obs_ref, w1_ref, b1_ref, wh_ref, bh_ref, eps_ref, out_ref):
    A = eps_ref.shape[-1]

    # hidden = relu(obs @ W1 + b1)
    h = jnp.dot(obs_ref[...], w1_ref[...], preferred_element_type=jnp.float32)
    h = jnp.maximum(h + b1_ref[...], 0.0)

    # Fused heads: one matmul for [mu | log_std] columns.
    heads = jnp.dot(h, wh_ref[...], preferred_element_type=jnp.float32) + bh_ref[...]

    # mu = tanh(heads[:, :A]) * 2
    mu = jnp.tanh(heads[:, :A]) * 2.0

    # std = exp(softplus(ls)) == exp(log(1 + e^ls)) == 1 + e^ls
    std = 1.0 + jnp.exp(heads[:, A:])

    # Normal(mu, std).sample() == mu + std * eps
    action = mu + std * eps_ref[...]

    # Single lane-contiguous store: [action | mu | std]
    out_ref[...] = jnp.concatenate([action, mu, std], axis=-1)


def policy_net_forward(obs, params, eps, *, batch_tile=512):
    """Runs PolicyNet forward. Returns (action, (mu, std)); (mu, std) stand in
    for torch.distributions.Normal(mu, std)."""
    w1, b1, wmu, bmu, wls, bls = params
    B, obs_dim = obs.shape
    H = w1.shape[1]
    A = wmu.shape[1]

    # Pack the two head layers into a single (H, 2A) weight / (1, 2A) bias.
    wh = jnp.concatenate([wmu, wls], axis=1)
    bh = jnp.concatenate([bmu, bls], axis=1)

    # Batch tile: full batch when small, otherwise stream 512-row tiles
    # (per-tile footprint is tiny; safe for v7x's 64 MiB VMEM too).
    TB = B if B <= batch_tile else batch_tile
    grid = (pl.cdiv(B, TB),)

    packed = pl.pallas_call(
        _policy_kernel,
        out_shape=jax.ShapeDtypeStruct((B, 3 * A), jnp.float32),
        grid=grid,
        in_specs=[
            pl.BlockSpec((TB, obs_dim), lambda i: (i, 0)),   # obs (streamed)
            pl.BlockSpec((obs_dim, H), lambda i: (0, 0)),    # w1 (resident)
            pl.BlockSpec((1, H), lambda i: (0, 0)),          # b1 (resident)
            pl.BlockSpec((H, 2 * A), lambda i: (0, 0)),      # fused head W
            pl.BlockSpec((1, 2 * A), lambda i: (0, 0)),      # fused head b
            pl.BlockSpec((TB, A), lambda i: (i, 0)),         # eps (streamed)
        ],
        out_specs=pl.BlockSpec((TB, 3 * A), lambda i: (i, 0)),
        compiler_params=pltpu.CompilerParams(
            dimension_semantics=("parallel",)),
    )(obs, w1, b1, wh, bh, eps)

    action = packed[:, :A]
    mu = packed[:, A:2 * A]
    std = packed[:, 2 * A:]
    return action, (mu, std)


def init_policy_params(key, obs_dim, hidden_dim, action_dim, init_w=0.003):
    """Parameter init matching the PyTorch module.

    hidden: nn.Linear default init, U(-1/sqrt(in), 1/sqrt(in)).
    mu_layer / log_std_layer: initialize_uniformly -> U(-0.003, 0.003).
    Weights stored as (in_dim, out_dim) (transposed vs. PyTorch); biases kept
    2D (1, out_dim) for clean in-kernel broadcasting.
    """
    k1, k2, k3, k4, k5, k6 = jax.random.split(key, 6)
    bound = 1.0 / jnp.sqrt(jnp.float32(obs_dim))
    w1 = jax.random.uniform(k1, (obs_dim, hidden_dim), jnp.float32, -bound, bound)
    b1 = jax.random.uniform(k2, (1, hidden_dim), jnp.float32, -bound, bound)
    wmu = jax.random.uniform(k3, (hidden_dim, action_dim), jnp.float32, -init_w, init_w)
    bmu = jax.random.uniform(k4, (1, action_dim), jnp.float32, -init_w, init_w)
    wls = jax.random.uniform(k5, (hidden_dim, action_dim), jnp.float32, -init_w, init_w)
    bls = jax.random.uniform(k6, (1, action_dim), jnp.float32, -init_w, init_w)
    return (w1, b1, wmu, bmu, wls, bls)


def _reference_forward(obs, params, eps):
    """Pure-JAX reference of the PyTorch forward (for correctness check)."""
    w1, b1, wmu, bmu, wls, bls = params
    h = jnp.maximum(obs @ w1 + b1, 0.0)
    mu = jnp.tanh(h @ wmu + bmu) * 2.0
    log_std = jax.nn.softplus(h @ wls + bls)
    std = jnp.exp(log_std)
    return mu + std * eps, mu, std


if __name__ == "__main__":
    obs_dim, hidden_dim, action_dim = 16, 32, 8
    batch = 8

    key = jax.random.PRNGKey(0)
    k_obs, k_param, k_eps = jax.random.split(key, 3)

    obs = jax.random.normal(k_obs, (batch, obs_dim), jnp.float32)
    params = init_policy_params(k_param, obs_dim, hidden_dim, action_dim)
    eps = jax.random.normal(k_eps, (batch, action_dim), jnp.float32)

    action, (mu, std) = jax.jit(policy_net_forward)(obs, params, eps)
    jax.block_until_ready((action, mu, std))

    # sanity check against pure-JAX reference
    a_ref, mu_ref, std_ref = _reference_forward(obs, params, eps)
    assert jnp.allclose(action, a_ref, atol=1e-5), "action mismatch"
    assert jnp.allclose(mu, mu_ref, atol=1e-5), "mu mismatch"
    assert jnp.allclose(std, std_ref, atol=1e-5), "std mismatch"

    print("KERNEL_OK")
</pallas_src>

<mosaic_0001>
module attributes {stable_mosaic.version = 11 : i64} {
  func.func @_policy_kernel(%arg0: i32, %arg1: memref<8x16xf32, #tpu.memory_space<vmem>>, %arg2: memref<16x32xf32, #tpu.memory_space<vmem>>, %arg3: memref<1x32xf32, #tpu.memory_space<vmem>>, %arg4: memref<32x16xf32, #tpu.memory_space<vmem>>, %arg5: memref<1x16xf32, #tpu.memory_space<vmem>>, %arg6: memref<8x8xf32, #tpu.memory_space<vmem>>, %arg7: memref<8x24xf32, #tpu.memory_space<vmem>>) attributes {dimension_semantics = [#tpu.dimension_semantics<parallel>], iteration_bounds = array<i64: 1>, scalar_prefetch = 0 : i64, scratch_operands = 0 : i64, tpu.core_type = #tpu.core_type<tc>, window_params = [{transform_indices = @transform_0, window_bounds = array<i64: 8, 16>}, {pipeline_mode = #tpu.pipeline_mode<synchronous>, transform_indices = @transform_1, window_bounds = array<i64: 16, 32>}, {pipeline_mode = #tpu.pipeline_mode<synchronous>, transform_indices = @transform_2, window_bounds = array<i64: 1, 32>}, {pipeline_mode = #tpu.pipeline_mode<synchronous>, transform_indices = @transform_3, window_bounds = array<i64: 32, 16>}, {pipeline_mode = #tpu.pipeline_mode<synchronous>, transform_indices = @transform_4, window_bounds = array<i64: 1, 16>}, {transform_indices = @transform_5, window_bounds = array<i64: 8, 8>}, {transform_indices = @transform_6, window_bounds = array<i64: 8, 24>}]} {
    %c0 = arith.constant 0 : index
    %c0_0 = arith.constant 0 : index
    %0 = vector.load %arg1[%c0, %c0_0] : memref<8x16xf32, #tpu.memory_space<vmem>>, vector<8x16xf32>
    %c0_1 = arith.constant 0 : index
    %c0_2 = arith.constant 0 : index
    %1 = vector.load %arg2[%c0_1, %c0_2] : memref<16x32xf32, #tpu.memory_space<vmem>>, vector<16x32xf32>
    %cst = arith.constant dense<0.000000e+00> : vector<8x32xf32>
    %2 = tpu.matmul %0, %1, %cst {dimension_numbers = #tpu.dot_dimension_numbers<[1], [0], [0], [1], [0, 0, 1, 1], [], []>} : vector<8x16xf32>, vector<16x32xf32>, vector<8x32xf32> -> vector<8x32xf32>
    %c0_3 = arith.constant 0 : index
    %c0_4 = arith.constant 0 : index
    %3 = vector.load %arg3[%c0_3, %c0_4] : memref<1x32xf32, #tpu.memory_space<vmem>>, vector<1x32xf32>
    %4 = vector.broadcast %3 : vector<1x32xf32> to vector<8x32xf32>
    %5 = arith.addf %2, %4 : vector<8x32xf32>
    %cst_5 = arith.constant 0.000000e+00 : f32
    %6 = vector.broadcast %cst_5 : f32 to vector<8x32xf32>
    %7 = arith.maximumf %5, %6 : vector<8x32xf32>
    %c0_6 = arith.constant 0 : index
    %c0_7 = arith.constant 0 : index
    %8 = vector.load %arg4[%c0_6, %c0_7] : memref<32x16xf32, #tpu.memory_space<vmem>>, vector<32x16xf32>
    %cst_8 = arith.constant dense<0.000000e+00> : vector<8x16xf32>
    %9 = tpu.matmul %7, %8, %cst_8 {dimension_numbers = #tpu.dot_dimension_numbers<[1], [0], [0], [1], [0, 0, 1, 1], [], []>} : vector<8x32xf32>, vector<32x16xf32>, vector<8x16xf32> -> vector<8x16xf32>
    %c0_9 = arith.constant 0 : index
    %c0_10 = arith.constant 0 : index
    %10 = vector.load %arg5[%c0_9, %c0_10] : memref<1x16xf32, #tpu.memory_space<vmem>>, vector<1x16xf32>
    %11 = vector.broadcast %10 : vector<1x16xf32> to vector<8x16xf32>
    %12 = arith.addf %9, %11 : vector<8x16xf32>
    %13 = vector.extract_strided_slice %12 {offsets = [0, 0], sizes = [8, 8], strides = [1, 1]} : vector<8x16xf32> to vector<8x8xf32>
    %14 = math.tanh %13 : vector<8x8xf32>
    %cst_11 = arith.constant 2.000000e+00 : f32
    %15 = vector.broadcast %cst_11 : f32 to vector<8x8xf32>
    %16 = arith.mulf %14, %15 : vector<8x8xf32>
    %17 = vector.extract_strided_slice %12 {offsets = [0, 8], sizes = [8, 8], strides = [1, 1]} : vector<8x16xf32> to vector<8x8xf32>
    %18 = math.exp %17 : vector<8x8xf32>
    %cst_12 = arith.constant 1.000000e+00 : f32
    %19 = vector.broadcast %cst_12 : f32 to vector<8x8xf32>
    %20 = arith.addf %19, %18 : vector<8x8xf32>
    %c0_13 = arith.constant 0 : index
    %c0_14 = arith.constant 0 : index
    %21 = vector.load %arg6[%c0_13, %c0_14] : memref<8x8xf32, #tpu.memory_space<vmem>>, vector<8x8xf32>
    %22 = arith.mulf %20, %21 : vector<8x8xf32>
    %23 = arith.addf %16, %22 : vector<8x8xf32>
    %24 = tpu.concatenate %23, %16, %20 in 1 : vector<8x8xf32>, vector<8x8xf32>, vector<8x8xf32> -> vector<8x24xf32>
    %c0_15 = arith.constant 0 : index
    %c0_16 = arith.constant 0 : index
    %25 = vector.load %arg7[%c0_15, %c0_16] : memref<8x24xf32, #tpu.memory_space<vmem>>, vector<8x24xf32>
    tpu.vector_store %arg7[%c0_15, %c0_16], %24 {strides = array<i32>} : memref<8x24xf32, #tpu.memory_space<vmem>>, vector<8x24xf32>,
    return
  }
  func.func @transform_0(%arg0: i32) -> (i32, i32) {
    %c0_i32 = arith.constant 0 : i32
    %c0_i32_0 = arith.constant 0 : i32
    return %arg0, %c0_i32 : i32, i32
  }
  func.func @transform_1(%arg0: i32) -> (i32, i32) {
    %c0_i32 = arith.constant 0 : i32
    %c0_i32_0 = arith.constant 0 : i32
    %c0_i32_1 = arith.constant 0 : i32
    return %c0_i32, %c0_i32_0 : i32, i32
  }
  func.func @transform_2(%arg0: i32) -> (i32, i32) {
    %c0_i32 = arith.constant 0 : i32
    %c0_i32_0 = arith.constant 0 : i32
    %c0_i32_1 = arith.constant 0 : i32
    return %c0_i32, %c0_i32_0 : i32, i32
  }
  func.func @transform_3(%arg0: i32) -> (i32, i32) {
    %c0_i32 = arith.constant 0 : i32
    %c0_i32_0 = arith.constant 0 : i32
    %c0_i32_1 = arith.constant 0 : i32
    return %c0_i32, %c0_i32_0 : i32, i32
  }
  func.func @transform_4(%arg0: i32) -> (i32, i32) {
    %c0_i32 = arith.constant 0 : i32
    %c0_i32_0 = arith.constant 0 : i32
    %c0_i32_1 = arith.constant 0 : i32
    return %c0_i32, %c0_i32_0 : i32, i32
  }
  func.func @transform_5(%arg0: i32) -> (i32, i32) {
    %c0_i32 = arith.constant 0 : i32
    %c0_i32_0 = arith.constant 0 : i32
    return %arg0, %c0_i32 : i32, i32
  }
  func.func @transform_6(%arg0: i32) -> (i32, i32) {
    %c0_i32 = arith.constant 0 : i32
    %c0_i32_0 = arith.constant 0 : i32
    return %arg0, %c0_i32 : i32, i32
  }
}

</mosaic_0001>

<llo_original>
// kernel: policy_net_forward.1
$region0: #{policy_net_forward.1}
  #allocation0 [shape = 'u32[]', space=smem, size = 0x4, offset = 0x4, fixed_abs, tag = 'smem constant byte address 0x4 - core index']
  #allocation1 [shape = 'u32[144,128]{1,0:T(1,128)}', space=vmem, size = 0x12000, scoped, tag = 'internal scratch']
  %s0 = inlined_call_operand.vmem [shape: f32[8,16], index: 0, kind: input, shape index: {}]
  %s1 = inlined_call_operand.vmem [shape: f32[16,32], index: 1, kind: input, shape index: {}]
  %s2 = inlined_call_operand.vmem [shape: f32[1,32], index: 2, kind: input, shape index: {}]
  %s3 = inlined_call_operand.vmem [shape: f32[32,16], index: 3, kind: input, shape index: {}]
  %s4 = inlined_call_operand.vmem [shape: f32[1,16], index: 4, kind: input, shape index: {}]
  %s5 = inlined_call_operand.vmem [shape: f32[8,8], index: 5, kind: input, shape index: {}]
  %s6 = inlined_call_operand.vmem [shape: f32[8,24], index: 6, kind: output, shape index: {}]
  %s7 = sld [smem:[#allocation0]]
  $region34: #{policy_net_forward.1} parent=0
    _
  %s9 = ssub.s32 1, %s7
  %s10 = scalar_select 0, %s9, %s7
  // Predicated region
  $region2: #{policy_net_forward.1} parent=0 // pred_check
    _
  $region3: #{policy_net_forward.1} parent=0 // pred_check_branch
    %12 = sbr.rel (0) target = $region5
  $region4: #{policy_net_forward.1} parent=0 // pred_region
    _
  $region5: #{policy_net_forward.1} parent=0 // pred_fallthru
    _
  // Predicated region
  $region6: #{policy_net_forward.1} parent=0 // pred_check
    _
  $region7: #{policy_net_forward.1} parent=0 // pred_check_branch
    %14 = sbr.rel (0) target = $region9
  $region8: #{policy_net_forward.1} parent=0 // pred_region
    _
  $region9: #{policy_net_forward.1} parent=0 // pred_fallthru
    _
  // Predicated region
  $region10: #{policy_net_forward.1} parent=0 // pred_check
    _
  $region11: #{policy_net_forward.1} parent=0 // pred_check_branch
    %16 = sbr.rel (0) target = $region13
  $region12: #{policy_net_forward.1} parent=0 // pred_region
    _
  $region13: #{policy_net_forward.1} parent=0 // pred_fallthru
    _
  // Predicated region
  $region14: #{policy_net_forward.1} parent=0 // pred_check
    _
  $region15: #{policy_net_forward.1} parent=0 // pred_check_branch
    %18 = sbr.rel (0) target = $region17
  $region16: #{policy_net_forward.1} parent=0 // pred_region
    _
  $region17: #{policy_net_forward.1} parent=0 // pred_fallthru
    _
  // Predicated region
  $region18: #{policy_net_forward.1} parent=0 // pred_check
    _
  $region19: #{policy_net_forward.1} parent=0 // pred_check_branch
    %20 = sbr.rel (0) target = $region21
  $region20: #{policy_net_forward.1} parent=0 // pred_region
    _
  $region21: #{policy_net_forward.1} parent=0 // pred_fallthru
    _
  // Predicated region
  $region22: #{policy_net_forward.1} parent=0 // pred_check
    _
  $region23: #{policy_net_forward.1} parent=0 // pred_check_branch
    %22 = sbr.rel (0) target = $region25
  $region24: #{policy_net_forward.1} parent=0 // pred_region
    _
  $region25: #{policy_net_forward.1} parent=0 // pred_fallthru
    _
  %v23 = vld [vmem:[%s0] sm:$0xff]
  %v24 = vld [vmem:[%s1] sm:$0xff]
  %v25 = vld [vmem:[%s1 + $0x8] sm:$0xff]
  %v26 = vld [vmem:[%s2] sm:$0x1]
  %v28 = vlaneseq
  %v29 = vshrl.u32 %v28, 7
  %v30 = vsub.s32 0, %v29
  %v31 = vrot.slane %v26, %v30
  %vm33 = vcmask 130048
  %v35 = vsel %vm33, %v23, 0
  %37 = vmatprep.subr.mxu0 0.0
  %38 = vmatpush1.msra.mxu0 0.0
  %39 = vmatprep.subr.mxu0 0.0
  %40 = vmatpush1.msra.mxu0 0.0
  %41 = vmatprep.subr.mxu0 0.0
  %42 = vmatpush1.msra.mxu0 0.0
  %43 = vmatprep.subr.mxu0 0.0
  %44 = vmatpush1.msra.mxu0 0.0
  %45 = vmatprep.subr.mxu0 0.0
  %46 = vmatpush1.msra.mxu0 0.0
  %47 = vmatprep.subr.mxu0 0.0
  %48 = vmatpush1.msra.mxu0 0.0
  %49 = vmatprep.subr.mxu0 0.0
  %50 = vmatpush1.msra.mxu0 0.0
  %51 = vmatprep.subr.mxu0 0.0
  %52 = vmatpush1.msra.mxu0 0.0
  %53 = vmatprep.subr.mxu0 0.0
  %54 = vmatpush1.msra.mxu0 0.0
  %55 = vmatprep.subr.mxu0 0.0
  %56 = vmatpush1.msra.mxu0 0.0
  %57 = vmatprep.subr.mxu0 0.0
  %58 = vmatpush1.msra.mxu0 0.0
  %59 = vmatprep.subr.mxu0 0.0
  %60 = vmatpush1.msra.mxu0 0.0
  %61 = vmatprep.subr.mxu0 0.0
  %62 = vmatpush1.msra.mxu0 0.0
  %63 = vmatprep.subr.mxu0 0.0
  %64 = vmatpush1.msra.mxu0 0.0
  %65 = vmatprep.subr.mxu0 0.0
  %66 = vmatpush1.msra.mxu0 %v25
  %67 = vmatprep.subr.mxu0 0.0
  %68 = vmatpush1.msra.mxu0 %v24
  %69 = vmatprep.subr.mxu0 0.0
  %70 = vmatpush2.msra.mxu0 0.0
  %71 = vmatprep.subr.mxu0 0.0
  %72 = vmatpush2.msra.mxu0 0.0
  %73 = vmatprep.subr.mxu0 0.0
  %74 = vmatpush2.msra.mxu0 0.0
  %75 = vmatprep.subr.mxu0 0.0
  %76 = vmatpush2.msra.mxu0 0.0
  %77 = vmatprep.subr.mxu0 0.0
  %78 = vmatpush2.msra.mxu0 0.0
  %79 = vmatprep.subr.mxu0 0.0
  %80 = vmatpush2.msra.mxu0 0.0
  %81 = vmatprep.subr.mxu0 0.0
  %82 = vmatpush2.msra.mxu0 0.0
  %83 = vmatprep.subr.mxu0 0.0
  %84 = vmatpush2.msra.mxu0 0.0
  %85 = vmatprep.subr.mxu0 0.0
  %86 = vmatpush2.msra.mxu0 0.0
  %87 = vmatprep.subr.mxu0 0.0
  %88 = vmatpush2.msra.mxu0 0.0
  %89 = vmatprep.subr.mxu0 0.0
  %90 = vmatpush2.msra.mxu0 0.0
  %91 = vmatprep.subr.mxu0 0.0
  %92 = vmatpush2.msra.mxu0 0.0
  %93 = vmatprep.subr.mxu0 0.0
  %94 = vmatpush2.msra.mxu0 0.0
  %95 = vmatprep.subr.mxu0 0.0
  %96 = vmatpush2.msra.mxu0 0.0
  %97 = vmatprep.subr.mxu0 0.0
  %98 = vmatpush2.msra.mxu0 0.0
  %99 = vmatprep.subr.mxu0 0.0
  %100 = vmatpush2.msra.mxu0 0.0
  %101 = vmatprep.mubr.f32.mxu0 0.0
  %102 = vmatmul.mubr.f32.gmra.mxu0 %v35
  %v103 = vpop.f32.mrf.mxu0
  %v104 = vadd.f32 %v31, %v103
  %v105 = vpop.f32.mrf.mxu0
  %106 = vdwg.mxu0
  %v107 = vmax.f32 %v104, 0.0
  %v108 = vld [vmem:[%s3] sm:$0xff]
  %v109 = vld [vmem:[%s3 + $0x8] sm:$0xff]
  %v110 = vld [vmem:[%s3 + $0x10] sm:$0xff]
  %v111 = vld [vmem:[%s3 + $0x18] sm:$0xff]
  %v112 = vld [vmem:[%s4] sm:$0x1]
  %v114 = vlaneseq
  %v115 = vshrl.u32 %v114, 7
  %v116 = vsub.s32 0, %v115
  %v117 = vrot.slane %v112, %v116
  %vm119 = vcmask 261120
  %v121 = vsel %vm119, %v107, 0
  %123 = vmatprep.subr.mxu0 0.0
  %124 = vmatpush1.msra.mxu0 0.0
  %125 = vmatprep.subr.mxu0 0.0
  %126 = vmatpush1.msra.mxu0 0.0
  %127 = vmatprep.subr.mxu0 0.0
  %128 = vmatpush1.msra.mxu0 0.0
  %129 = vmatprep.subr.mxu0 0.0
  %130 = vmatpush1.msra.mxu0 0.0
  %131 = vmatprep.subr.mxu0 0.0
  %132 = vmatpush1.msra.mxu0 0.0
  %133 = vmatprep.subr.mxu0 0.0
  %134 = vmatpush1.msra.mxu0 0.0
  %135 = vmatprep.subr.mxu0 0.0
  %136 = vmatpush1.msra.mxu0 0.0
  %137 = vmatprep.subr.mxu0 0.0
  %138 = vmatpush1.msra.mxu0 0.0
  %139 = vmatprep.subr.mxu0 0.0
  %140 = vmatpush1.msra.mxu0 0.0
  %141 = vmatprep.subr.mxu0 0.0
  %142 = vmatpush1.msra.mxu0 0.0
  %143 = vmatprep.subr.mxu0 0.0
  %144 = vmatpush1.msra.mxu0 0.0
  %145 = vmatprep.subr.mxu0 0.0
  %146 = vmatpush1.msra.mxu0 0.0
  %147 = vmatprep.subr.mxu0 0.0
  %148 = vmatpush1.msra.mxu0 %v111
  %149 = vmatprep.subr.mxu0 0.0
  %150 = vmatpush1.msra.mxu0 %v110
  %151 = vmatprep.subr.mxu0 0.0
  %152 = vmatpush1.msra.mxu0 %v109
  %153 = vmatprep.subr.mxu0 0.0
  %154 = vmatpush1.msra.mxu0 %v108
  %155 = vmatprep.subr.mxu0 0.0
  %156 = vmatpush2.msra.mxu0 0.0
  %157 = vmatprep.subr.mxu0 0.0
  %158 = vmatpush2.msra.mxu0 0.0
  %159 = vmatprep.subr.mxu0 0.0
  %160 = vmatpush2.msra.mxu0 0.0
  %161 = vmatprep.subr.mxu0 0.0
  %162 = vmatpush2.msra.mxu0 0.0
  %163 = vmatprep.subr.mxu0 0.0
  %164 = vmatpush2.msra.mxu0 0.0
  %165 = vmatprep.subr.mxu0 0.0
  %166 = vmatpush2.msra.mxu0 0.0
  %167 = vmatprep.subr.mxu0 0.0
  %168 = vmatpush2.msra.mxu0 0.0
  %169 = vmatprep.subr.mxu0 0.0
  %170 = vmatpush2.msra.mxu0 0.0
  %171 = vmatprep.subr.mxu0 0.0
  %172 = vmatpush2.msra.mxu0 0.0
  %173 = vmatprep.subr.mxu0 0.0
  %174 = vmatpush2.msra.mxu0 0.0
  %175 = vmatprep.subr.mxu0 0.0
  %176 = vmatpush2.msra.mxu0 0.0
  %177 = vmatprep.subr.mxu0 0.0
  %178 = vmatpush2.msra.mxu0 0.0
  %179 = vmatprep.subr.mxu0 0.0
  %180 = vmatpush2.msra.mxu0 0.0
  %181 = vmatprep.subr.mxu0 0.0
  %182 = vmatpush2.msra.mxu0 0.0
  %183 = vmatprep.subr.mxu0 0.0
  %184 = vmatpush2.msra.mxu0 0.0
  %185 = vmatprep.subr.mxu0 0.0
  %186 = vmatpush2.msra.mxu0 0.0
  %187 = vmatprep.mubr.f32.mxu0 0.0
  %188 = vmatmul.mubr.f32.gmra.mxu0 %v121
  %v189 = vpop.f32.mrf.mxu0
  %v190 = vadd.f32 %v117, %v189
  %v191 = vpop.f32.mrf.mxu0
  %192 = vdwg.mxu0
  %v193 = vtanh.pop %v190
  %v194 = vmul.f32 %v193, 2.0
  %v195 = vmul.f32 %v190, 1.442695
  %v196 = vpow.pop %v195
  %v197 = vadd.f32 %v196, 1.0
  %v198 = vld [vmem:[%s5] sm:$0xff]
  %200 = vrot.lane.b32.xlu0 %v198, 8
  %v201 = vpop.permute.xlu0 %200
  %v203 = vmul.f32 %v197, %v201
  %205 = vrot.lane.b32.xlu0 %v203, 120
  %v206 = vpop.permute.xlu0 %205
  %v208 = vadd.f32 %v194, %v206
  %210 = vrot.lane.b32.xlu0 %v194, 8
  %v211 = vpop.permute.xlu0 %210
  %214 = vrot.lane.b32.xlu0 %v197, 8
  %v215 = vpop.permute.xlu0 %214
  %vm217 = vcmask 64512
  %v218 = vsel %vm217, %v208, %v211
  %v219 = vsel %vm33, %v218, %v215
  %vm220 = vcmask 195584
  %221 = vst.msk [vmem:[%s6] sm:$0xff] %vm220, %v219
  // Predicated region
  $region26: #{policy_net_forward.1} parent=0 // pred_check
    _
  $region27: #{policy_net_forward.1} parent=0 // pred_check_branch
    %223 = sbr.rel (0) target = $region29
  $region28: #{policy_net_forward.1} parent=0 // pred_region
    _
  $region29: #{policy_net_forward.1} parent=0 // pred_fallthru
    _
  // Predicated region
  $region30: #{policy_net_forward.1} parent=0 // pred_check
    _
  $region31: #{policy_net_forward.1} parent=0 // pred_check_branch
    %225 = sbr.rel (0) target = $region33
  $region32: #{policy_net_forward.1} parent=0 // pred_region
    _
  $region33: #{policy_net_forward.1} parent=0 // pred_fallthru
    _

</llo_original>
